<compile_context>
chip_gen: v5e
topology: v5e:2x2
jax: 0.10.0
libtpu: 0.0.40
codegen_flags: <defaults>
</compile_context>

<pallas_src>
import functools

import jax
import jax.numpy as jnp
from jax.experimental import pallas as pl
from jax.experimental.pallas import tpu as pltpu


_VMEM_BLOCK_BUDGET = 12 * 1024 * 1024   # for double-buffered input+output blocks
_VMEM_LIMIT_BYTES = 32 * 1024 * 1024    # safe on v5e/v6e (128 MiB) and v7x (64 MiB)


def _channel_attention_kernel(x_ref, w1_ref, b1_ref, w2_ref, b2_ref, o_ref,
                              *, hw_true, hw_padded):
    # x_ref: (Bt, C, HWp) block covering Bt batch elements.
    x = x_ref[...].astype(jnp.float32)   # compute in f32 (bf16-safe on v5e)
    bt = x.shape[0]

    # Global average pool over the lane axis.  Zero padding leaves the sum
    # unchanged; divide by the true spatial size.
    avg = jnp.sum(x, axis=-1) * (1.0 / hw_true)              # (Bt, C)

    # Global max pool; mask padded lanes with -inf (only when padded).
    if hw_padded != hw_true:
        lane = jax.lax.broadcasted_iota(jnp.int32, (1, 1, hw_padded), 2)
        x_for_max = jnp.where(lane < hw_true, x, -jnp.inf)
    else:
        x_for_max = x
    mx = jnp.max(x_for_max, axis=-1)                         # (Bt, C)

    # Shared MLP, fused over the avg/max branches: a single (2*Bt, C) pass.
    # Weights are stored transposed vs. torch.nn.Linear, i.e. (in, out).
    pooled = jnp.concatenate([avg, mx], axis=0)              # (2*Bt, C)
    h = jnp.dot(pooled, w1_ref[...], preferred_element_type=jnp.float32)
    h = jnp.maximum(h + b1_ref[...], 0.0)                    # (2*Bt, hidden)
    y = jnp.dot(h, w2_ref[...], preferred_element_type=jnp.float32) + b2_ref[...]

    att = jax.nn.sigmoid(y[:bt] + y[bt:])                    # (Bt, C)

    # Broadcast per-channel attention over the spatial (lane) axis and rescale.
    o_ref[...] = (x * att[:, :, None]).astype(o_ref.dtype)


def _pick_batch_tile(B, C, HWp, itemsize):
    """Largest divisor of B whose double-buffered in+out blocks fit the budget,
    preferring >= 2 grid steps so multi-TC chips can shard the grid."""
    per_batch = 2 * 2 * C * HWp * itemsize   # (input + output) x double buffer
    bt = 1
    for d in range(1, B + 1):
        if B % d == 0 and d * per_batch <= _VMEM_BLOCK_BUDGET:
            bt = d
    if B > 1 and B // bt < 2:
        smaller = [d for d in range(1, bt) if B % d == 0]
        if smaller:
            bt = max(smaller)
    return bt


def channel_attention(x, w1, b1, w2, b2):
    """x: (B, C, H, W). w1: (C, hidden), b1: (hidden,), w2: (hidden, C), b2: (C,).
    Weights are the transpose of torch.nn.Linear weights ((in, out) layout)."""
    B, C, H, W = x.shape
    HW = H * W
    hidden = w1.shape[1]

    # Keep the last (lane) dim a multiple of 128 for lane-dense DMA/stores.
    HWp = ((HW + 127) // 128) * 128
    x_flat = x.reshape(B, C, HW)
    if HWp != HW:
        x_flat = jnp.pad(x_flat, ((0, 0), (0, 0), (0, HWp - HW)))

    b1_2d = b1.reshape(1, hidden)
    b2_2d = b2.reshape(1, C)

    Bt = _pick_batch_tile(B, C, HWp, jnp.dtype(x.dtype).itemsize)
    grid = (B // Bt,)

    kernel = functools.partial(_channel_attention_kernel,
                               hw_true=HW, hw_padded=HWp)

    out_flat = pl.pallas_call(
        kernel,
        out_shape=jax.ShapeDtypeStruct((B, C, HWp), x.dtype),
        grid_spec=pltpu.PrefetchScalarGridSpec(
            num_scalar_prefetch=0,
            grid=grid,
            in_specs=[
                pl.BlockSpec((Bt, C, HWp), lambda i: (i, 0, 0)),   # x
                # Constant-index weight/bias blocks stay resident in VMEM
                # across grid steps (no re-DMA).
                pl.BlockSpec((C, hidden), lambda i: (0, 0)),       # w1 (in, out)
                pl.BlockSpec((1, hidden), lambda i: (0, 0)),       # b1
                pl.BlockSpec((hidden, C), lambda i: (0, 0)),       # w2 (in, out)
                pl.BlockSpec((1, C), lambda i: (0, 0)),            # b2
            ],
            out_specs=pl.BlockSpec((Bt, C, HWp), lambda i: (i, 0, 0)),
        ),
        compiler_params=pltpu.CompilerParams(
            dimension_semantics=("parallel",),
            vmem_limit_bytes=_VMEM_LIMIT_BYTES,
        ),
    )(x_flat, w1, b1_2d, w2, b2_2d)

    if HWp != HW:
        out_flat = out_flat[:, :, :HW]
    return out_flat.reshape(B, C, H, W)


def reference_channel_attention(x, w1, b1, w2, b2):
    """Pure-JAX reference matching the PyTorch forward."""
    avg = jnp.mean(x, axis=(2, 3))          # (B, C)
    mx = jnp.max(x, axis=(2, 3))            # (B, C)

    def fc(v):
        h = jnp.maximum(v @ w1 + b1, 0.0)
        return h @ w2 + b2

    att = jax.nn.sigmoid(fc(avg) + fc(mx))  # (B, C)
    return x * att[:, :, None, None]


if __name__ == "__main__":
    def run_case(B, C, H, W, reduction, key):
        hidden = max(1, C // reduction)
        kx, k1, k2, k3, k4 = jax.random.split(key, 5)
        x = jax.random.normal(kx, (B, C, H, W), dtype=jnp.float32)
        # Deterministic parameter init (stored as (in, out), i.e. torch W^T).
        w1 = jax.random.normal(k1, (C, hidden), dtype=jnp.float32) * 0.1
        b1 = jax.random.normal(k2, (hidden,), dtype=jnp.float32) * 0.1
        w2 = jax.random.normal(k3, (hidden, C), dtype=jnp.float32) * 0.1
        b2 = jax.random.normal(k4, (C,), dtype=jnp.float32) * 0.1

        out = jax.block_until_ready(channel_attention(x, w1, b1, w2, b2))
        ref = reference_channel_attention(x, w1, b1, w2, b2)
        assert out.shape == (B, C, H, W)
        assert jnp.allclose(out, ref, atol=1e-5, rtol=1e-5), "mismatch vs reference"

    key = jax.random.PRNGKey(0)
    k_a, k_b = jax.random.split(key)
    # in_channels=32, reduction=16 (hidden=2), HW=256: lane-dense, 2 parallel tiles.
    run_case(2, 32, 16, 16, 16, k_a)
    # HW=49 -> padded to 128: exercises the masked mean/max padding path.
    run_case(3, 32, 7, 7, 16, k_b)

    print("KERNEL_OK")
</pallas_src>

<mosaic_0001>
module attributes {stable_mosaic.version = 11 : i64} {
  func.func @_channel_attention_kernel(%arg0: i32, %arg1: memref<1x32x256xf32, #tpu.memory_space<vmem>>, %arg2: memref<32x2xf32, #tpu.memory_space<vmem>>, %arg3: memref<1x2xf32, #tpu.memory_space<vmem>>, %arg4: memref<2x32xf32, #tpu.memory_space<vmem>>, %arg5: memref<1x32xf32, #tpu.memory_space<vmem>>, %arg6: memref<1x32x256xf32, #tpu.memory_space<vmem>>) attributes {dimension_semantics = [#tpu.dimension_semantics<parallel>], iteration_bounds = array<i64: 2>, scalar_prefetch = 0 : i64, scratch_operands = 0 : i64, tpu.core_type = #tpu.core_type<tc>, window_params = [{transform_indices = @transform_0, window_bounds = array<i64: 1, 32, 256>}, {pipeline_mode = #tpu.pipeline_mode<synchronous>, transform_indices = @transform_1, window_bounds = array<i64: 32, 2>}, {pipeline_mode = #tpu.pipeline_mode<synchronous>, transform_indices = @transform_2, window_bounds = array<i64: 1, 2>}, {pipeline_mode = #tpu.pipeline_mode<synchronous>, transform_indices = @transform_3, window_bounds = array<i64: 2, 32>}, {pipeline_mode = #tpu.pipeline_mode<synchronous>, transform_indices = @transform_4, window_bounds = array<i64: 1, 32>}, {transform_indices = @transform_5, window_bounds = array<i64: 1, 32, 256>}]} {
    %c0 = arith.constant 0 : index
    %c0_0 = arith.constant 0 : index
    %c0_1 = arith.constant 0 : index
    %0 = vector.load %arg1[%c0, %c0_0, %c0_1] : memref<1x32x256xf32, #tpu.memory_space<vmem>>, vector<1x32x256xf32>
    %cst = arith.constant dense<0.000000e+00> : vector<1x32xf32>
    %1 = vector.multi_reduction <add>, %0, %cst [2] : vector<1x32x256xf32> to vector<1x32xf32>
    %cst_2 = arith.constant 3.906250e-03 : f32
    %2 = vector.broadcast %cst_2 : f32 to vector<1x32xf32>
    %3 = arith.mulf %1, %2 : vector<1x32xf32>
    %cst_3 = arith.constant dense<0xFF800000> : vector<1x32xf32>
    %4 = vector.multi_reduction <maximumf>, %0, %cst_3 [2] : vector<1x32x256xf32> to vector<1x32xf32>
    %5 = tpu.concatenate %3, %4 in 0 : vector<1x32xf32>, vector<1x32xf32> -> vector<2x32xf32>
    %c0_4 = arith.constant 0 : index
    %c0_5 = arith.constant 0 : index
    %6 = vector.load %arg2[%c0_4, %c0_5] : memref<32x2xf32, #tpu.memory_space<vmem>>, vector<32x2xf32>
    %cst_6 = arith.constant dense<0.000000e+00> : vector<2x2xf32>
    %7 = tpu.matmul %5, %6, %cst_6 {dimension_numbers = #tpu.dot_dimension_numbers<[1], [0], [0], [1], [0, 0, 1, 1], [], []>} : vector<2x32xf32>, vector<32x2xf32>, vector<2x2xf32> -> vector<2x2xf32>
    %c0_7 = arith.constant 0 : index
    %c0_8 = arith.constant 0 : index
    %8 = vector.load %arg3[%c0_7, %c0_8] : memref<1x2xf32, #tpu.memory_space<vmem>>, vector<1x2xf32>
    %9 = vector.broadcast %8 : vector<1x2xf32> to vector<2x2xf32>
    %10 = arith.addf %7, %9 : vector<2x2xf32>
    %cst_9 = arith.constant 0.000000e+00 : f32
    %11 = vector.broadcast %cst_9 : f32 to vector<2x2xf32>
    %12 = arith.maximumf %10, %11 : vector<2x2xf32>
    %c0_10 = arith.constant 0 : index
    %c0_11 = arith.constant 0 : index
    %13 = vector.load %arg4[%c0_10, %c0_11] : memref<2x32xf32, #tpu.memory_space<vmem>>, vector<2x32xf32>
    %cst_12 = arith.constant dense<0.000000e+00> : vector<2x32xf32>
    %14 = tpu.matmul %12, %13, %cst_12 {dimension_numbers = #tpu.dot_dimension_numbers<[1], [0], [0], [1], [0, 0, 1, 1], [], []>} : vector<2x2xf32>, vector<2x32xf32>, vector<2x32xf32> -> vector<2x32xf32>
    %c0_13 = arith.constant 0 : index
    %c0_14 = arith.constant 0 : index
    %15 = vector.load %arg5[%c0_13, %c0_14] : memref<1x32xf32, #tpu.memory_space<vmem>>, vector<1x32xf32>
    %16 = vector.broadcast %15 : vector<1x32xf32> to vector<2x32xf32>
    %17 = arith.addf %14, %16 : vector<2x32xf32>
    %18 = vector.extract_strided_slice %17 {offsets = [0, 0], sizes = [1, 32], strides = [1, 1]} : vector<2x32xf32> to vector<1x32xf32>
    %19 = vector.extract_strided_slice %17 {offsets = [1, 0], sizes = [1, 32], strides = [1, 1]} : vector<2x32xf32> to vector<1x32xf32>
    %20 = arith.addf %18, %19 : vector<1x32xf32>
    %21 = arith.negf %20 : vector<1x32xf32>
    %22 = math.exp %21 : vector<1x32xf32>
    %cst_15 = arith.constant 1.000000e+00 : f32
    %23 = vector.broadcast %cst_15 : f32 to vector<1x32xf32>
    %24 = arith.addf %23, %22 : vector<1x32xf32>
    %25 = arith.divf %23, %24 : vector<1x32xf32>
    %26 = vector.shape_cast %25 : vector<1x32xf32> to vector<1x32x1xf32>
    %27 = vector.broadcast %26 : vector<1x32x1xf32> to vector<1x32x256xf32>
    %28 = arith.mulf %0, %27 : vector<1x32x256xf32>
    %c0_16 = arith.constant 0 : index
    %c0_17 = arith.constant 0 : index
    %c0_18 = arith.constant 0 : index
    %29 = vector.load %arg6[%c0_16, %c0_17, %c0_18] : memref<1x32x256xf32, #tpu.memory_space<vmem>>, vector<1x32x256xf32>
    tpu.vector_store %arg6[%c0_16, %c0_17, %c0_18], %28 {strides = array<i32>} : memref<1x32x256xf32, #tpu.memory_space<vmem>>, vector<1x32x256xf32>,
    return
  }
  func.func @transform_0(%arg0: i32) -> (i32, i32, i32) {
    %c0_i32 = arith.constant 0 : i32
    %c0_i32_0 = arith.constant 0 : i32
    %c0_i32_1 = arith.constant 0 : i32
    return %arg0, %c0_i32, %c0_i32_0 : i32, i32, i32
  }
  func.func @transform_1(%arg0: i32) -> (i32, i32) {
    %c0_i32 = arith.constant 0 : i32
    %c0_i32_0 = arith.constant 0 : i32
    %c0_i32_1 = arith.constant 0 : i32
    return %c0_i32, %c0_i32_0 : i32, i32
  }
  func.func @transform_2(%arg0: i32) -> (i32, i32) {
    %c0_i32 = arith.constant 0 : i32
    %c0_i32_0 = arith.constant 0 : i32
    %c0_i32_1 = arith.constant 0 : i32
    return %c0_i32, %c0_i32_0 : i32, i32
  }
  func.func @transform_3(%arg0: i32) -> (i32, i32) {
    %c0_i32 = arith.constant 0 : i32
    %c0_i32_0 = arith.constant 0 : i32
    %c0_i32_1 = arith.constant 0 : i32
    return %c0_i32, %c0_i32_0 : i32, i32
  }
  func.func @transform_4(%arg0: i32) -> (i32, i32) {
    %c0_i32 = arith.constant 0 : i32
    %c0_i32_0 = arith.constant 0 : i32
    %c0_i32_1 = arith.constant 0 : i32
    return %c0_i32, %c0_i32_0 : i32, i32
  }
  func.func @transform_5(%arg0: i32) -> (i32, i32, i32) {
    %c0_i32 = arith.constant 0 : i32
    %c0_i32_0 = arith.constant 0 : i32
    %c0_i32_1 = arith.constant 0 : i32
    return %arg0, %c0_i32, %c0_i32_0 : i32, i32, i32
  }
}

</mosaic_0001>

<llo_original>
// kernel: tpu_custom_call.1
$region0: #{tpu_custom_call.1}
  #allocation0 [shape = 'u32[]', space=smem, size = 0x4, offset = 0x4, fixed_abs, tag = 'smem constant byte address 0x4 - core index']
  #allocation1 [shape = 'u32[72,128]{1,0:T(1,128)}', space=vmem, size = 0x9000, scoped, tag = 'internal scratch']
  %s0 = inlined_call_operand.hbm [shape: f32[2,32,256], index: 0, kind: input, shape index: {}]
  %s1 = inlined_call_operand.vmem [shape: f32[32,2], index: 1, kind: input, shape index: {}]
  %s2 = inlined_call_operand.vmem [shape: f32[1,2], index: 2, kind: input, shape index: {}]
  %s3 = inlined_call_operand.vmem [shape: f32[2,32], index: 3, kind: input, shape index: {}]
  %s4 = inlined_call_operand.vmem [shape: f32[1,32], index: 4, kind: input, shape index: {}]
  %s5 = inlined_call_operand.hbm [shape: f32[2,32,256], index: 5, kind: output, shape index: {}]
  %s6 = sld [smem:[#allocation0]]
  $region57: #{tpu_custom_call.1} parent=0
    _
  %s8 = ssub.s32 1, %s6
  %s9 = scalar_select 0, %s8, %s6
  $region1: #{tpu_custom_call.1} parent=0
    #allocation2 [shape = 'u8[65536]{0}', space=vmem, size = 0x10000, scoped, tag = 'input window, operand 0']
    #allocation3 [shape = 's32[2]{0}', space=sflag, size = 0x8, scoped, tag = 'scoped memory for tpu_custom_call.1']
    #allocation4 [shape = 's32[2]{0}', space=sflag, size = 0x8, scoped, tag = 'scoped memory for tpu_custom_call.1']
    #allocation5 [shape = 'u8[65536]{0}', space=vmem, size = 0x10000, scoped, tag = 'output window, operand 0']
    %10 = vsyncpa [#allocation3], 0
    %s11 = scalar_lea.sflag [#allocation3], 1
    %12 = vsyncpa %s11, 0
    %13 = vsyncpa [#allocation4], 0
    %s14 = scalar_lea.sflag [#allocation4], 1
    %15 = vsyncpa %s14, 0
    loop: start=0, step=1, limit=4
    $region2: #{tpu_custom_call.1} parent=1 // loop_pre_header
      _
    $region3: #{tpu_custom_call.1} parent=1 // loop_header
      %s17 = sphi 0, %s21
      %p18 = scmp.ge.s32.totalorder %s17, 4
      %s27 = sphi 0, %s29
      %s30 = sphi 0, %s27
      %s31 = sphi 0, %s30
      %s47 = sphi 0, %s31
      %s51 = sphi 0, %s51
      %s53 = sphi 0, %s51
      %s54 = sphi 0, %s53
      %s68 = sphi 0, %s54
      %s72 = sphi 0, %s72
      %s74 = sphi 0, %s72
      %s75 = sphi 0, %s74
      %s89 = sphi 0, %s75
      %s93 = sphi 0, %s93
      %s95 = sphi 0, %s93
      %s96 = sphi 0, %s95
      %s110 = sphi 0, %s96
      %s114 = sphi 0, %s114
      %s116 = sphi 0, %s114
      %s117 = sphi 0, %s116
      %s131 = sphi 0, %s117
      %s137 = sphi 0, %s139
      %s140 = sphi 0, %s137
      %s141 = sphi 0, %s140
      %s157 = sphi 0, %s141
    $region4: #{tpu_custom_call.1} parent=1 // loop_header_branch
      %20 = sbr.rel (%p18) target = $region8
    $region5: #{tpu_custom_call.1} parent=1 // loop_body
      %s22 = ssub.s32 %s17, 1
      %s23 = ssub.s32 %s17, 2
      %s24 = sadd.s32 %s17, 1
      %s25 = ssub.s32 %s17, %s24
      %p26 = scmp.eq.s32.totalorder %s25, 0
      %s28 = sadd.s32 %s27, 1
      %s29 = scalar_select %p26, %s27, %s28
      %p32 = pneg %p26
      %p33 = scmp.eq.s32.totalorder %s17, 1
      %p34 = por %p32, %p33
      %p35 = scmp.ne.s32.totalorder %s27, %s30
      %p36 = scmp.eq.s32.totalorder %s17, 0
      %p37 = por %p35, %p36
      %p38 = scmp.ne.s32.totalorder %s27, %s30
      %p39 = scmp.eq.s32.totalorder %s22, 1
      %p40 = por %p38, %p39
      %p41 = scmp.ne.s32.totalorder %s30, %s31
      %p42 = scmp.eq.s32.totalorder %s22, 0
      %p43 = por %p41, %p42
      %p44 = scmp.ne.s32.totalorder %s30, %s31
      %p45 = scmp.eq.s32.totalorder %s23, 1
      %p46 = por %p44, %p45
      %p48 = scmp.ne.s32.totalorder %s31, %s47
      %p49 = scmp.eq.s32.totalorder %s23, 0
      %p50 = por %p48, %p49
      %s52 = sadd.s32 %s51, 1
      %p55 = scmp.eq.s32.totalorder %s17, 1
      %p56 = scmp.ne.s32.totalorder %s51, %s53
      %p57 = scmp.eq.s32.totalorder %s17, 0
      %p58 = por %p56, %p57
      %p59 = scmp.ne.s32.totalorder %s51, %s53
      %p60 = scmp.eq.s32.totalorder %s22, 1
      %p61 = por %p59, %p60
      %p62 = scmp.ne.s32.totalorder %s53, %s54
      %p63 = scmp.eq.s32.totalorder %s22, 0
      %p64 = por %p62, %p63
      %p65 = scmp.ne.s32.totalorder %s53, %s54
      %p66 = scmp.eq.s32.totalorder %s23, 1
      %p67 = por %p65, %p66
      %p69 = scmp.ne.s32.totalorder %s54, %s68
      %p70 = scmp.eq.s32.totalorder %s23, 0
      %p71 = por %p69, %p70
      %s73 = sadd.s32 %s72, 1
      %p76 = scmp.eq.s32.totalorder %s17, 1
      %p77 = scmp.ne.s32.totalorder %s72, %s74
      %p78 = scmp.eq.s32.totalorder %s17, 0
      %p79 = por %p77, %p78
      %p80 = scmp.ne.s32.totalorder %s72, %s74
      %p81 = scmp.eq.s32.totalorder %s22, 1
      %p82 = por %p80, %p81
      %p83 = scmp.ne.s32.totalorder %s74, %s75
      %p84 = scmp.eq.s32.totalorder %s22, 0
      %p85 = por %p83, %p84
      %p86 = scmp.ne.s32.totalorder %s74, %s75
      %p87 = scmp.eq.s32.totalorder %s23, 1
      %p88 = por %p86, %p87
      %p90 = scmp.ne.s32.totalorder %s75, %s89
      %p91 = scmp.eq.s32.totalorder %s23, 0
      %p92 = por %p90, %p91
      %s94 = sadd.s32 %s93, 1
      %p97 = scmp.eq.s32.totalorder %s17, 1
      %p98 = scmp.ne.s32.totalorder %s93, %s95
      %p99 = scmp.eq.s32.totalorder %s17, 0
      %p100 = por %p98, %p99
      %p101 = scmp.ne.s32.totalorder %s93, %s95
      %p102 = scmp.eq.s32.totalorder %s22, 1
      %p103 = por %p101, %p102
      %p104 = scmp.ne.s32.totalorder %s95, %s96
      %p105 = scmp.eq.s32.totalorder %s22, 0
      %p106 = por %p104, %p105
      %p107 = scmp.ne.s32.totalorder %s95, %s96
      %p108 = scmp.eq.s32.totalorder %s23, 1
      %p109 = por %p107, %p108
      %p111 = scmp.ne.s32.totalorder %s96, %s110
      %p112 = scmp.eq.s32.totalorder %s23, 0
      %p113 = por %p111, %p112
      %s115 = sadd.s32 %s114, 1
      %p118 = scmp.eq.s32.totalorder %s17, 1
      %p119 = scmp.ne.s32.totalorder %s114, %s116
      %p120 = scmp.eq.s32.totalorder %s17, 0
      %p121 = por %p119, %p120
      %p122 = scmp.ne.s32.totalorder %s114, %s116
      %p123 = scmp.eq.s32.totalorder %s22, 1
      %p124 = por %p122, %p123
      %p125 = scmp.ne.s32.totalorder %s116, %s117
      %p126 = scmp.eq.s32.totalorder %s22, 0
      %p127 = por %p125, %p126
      %p128 = scmp.ne.s32.totalorder %s116, %s117
      %p129 = scmp.eq.s32.totalorder %s23, 1
      %p130 = por %p128, %p129
      %p132 = scmp.ne.s32.totalorder %s117, %s131
      %p133 = scmp.eq.s32.totalorder %s23, 0
      %p134 = por %p132, %p133
      %s135 = ssub.s32 %s17, %s24
      %p136 = scmp.eq.s32.totalorder %s135, 0
      %s138 = sadd.s32 %s137, 1
      %s139 = scalar_select %p136, %s137, %s138
      %p142 = pneg %p136
      %p143 = scmp.eq.s32.totalorder %s17, 1
      %p144 = por %p142, %p143
      %p145 = scmp.ne.s32.totalorder %s137, %s140
      %p146 = scmp.eq.s32.totalorder %s17, 0
      %p147 = por %p145, %p146
      %p148 = scmp.ne.s32.totalorder %s137, %s140
      %p149 = scmp.eq.s32.totalorder %s22, 1
      %p150 = por %p148, %p149
      %p151 = scmp.ne.s32.totalorder %s140, %s141
      %p152 = scmp.eq.s32.totalorder %s22, 0
      %p153 = por %p151, %p152
      %p154 = scmp.ne.s32.totalorder %s140, %s141
      %p155 = scmp.eq.s32.totalorder %s23, 1
      %p156 = por %p154, %p155
      %p158 = scmp.ne.s32.totalorder %s141, %s157
      %p159 = scmp.eq.s32.totalorder %s23, 0
      %p160 = por %p158, %p159
      %p161 = scmp.le.s32.totalorder 1, %s17
      %p162 = scmp.lt.s32.totalorder %s17, 3
      %p163 = pnand %p161, %p162
      %p164 = pneg %p163
      // Predicated region
      $region9: #{tpu_custom_call.1} parent=5 // pred_check
        _
      $region10: #{tpu_custom_call.1} parent=5 // pred_check_branch
        %166 = sbr.rel (%p163) target = $region12
      $region11: #{tpu_custom_call.1} parent=5 // pred_region
        %s167 = ssub.s32 %s17, 1
        // Predicated region
        $region13: #{tpu_custom_call.1} parent=11 // pred_check
          %p168 = pneg %p64
        $region14: #{tpu_custom_call.1} parent=11 // pred_check_branch
          %170 = sbr.rel (%p168) target = $region16
        $region15: #{tpu_custom_call.1} parent=11 // pred_region
          _
        $region16: #{tpu_custom_call.1} parent=11 // pred_fallthru
          _
        // Predicated region
        $region17: #{tpu_custom_call.1} parent=11 // pred_check
          %p171 = pneg %p85
        $region18: #{tpu_custom_call.1} parent=11 // pred_check_branch
          %173 = sbr.rel (%p171) target = $region20
        $region19: #{tpu_custom_call.1} parent=11 // pred_region
          _
        $region20: #{tpu_custom_call.1} parent=11 // pred_fallthru
          _
        // Predicated region
        $region21: #{tpu_custom_call.1} parent=11 // pred_check
          %p174 = pneg %p106
        $region22: #{tpu_custom_call.1} parent=11 // pred_check_branch
          %176 = sbr.rel (%p174) target = $region24
        $region23: #{tpu_custom_call.1} parent=11 // pred_region
          _
        $region24: #{tpu_custom_call.1} parent=11 // pred_fallthru
          _
        // Predicated region
        $region25: #{tpu_custom_call.1} parent=11 // pred_check
          %p177 = pneg %p127
        $region26: #{tpu_custom_call.1} parent=11 // pred_check_branch
          %179 = sbr.rel (%p177) target = $region28
        $region27: #{tpu_custom_call.1} parent=11 // pred_region
          _
        $region28: #{tpu_custom_call.1} parent=11 // pred_fallthru
          _
      $region12: #{tpu_custom_call.1} parent=5 // pred_fallthru
        _
      %p180 = scmp.lt.s32.totalorder %s17, 2
      // Predicated region
      $region29: #{tpu_custom_call.1} parent=5 // pred_check
        %p181 = pneg %p180
      $region30: #{tpu_custom_call.1} parent=5 // pred_check_branch
        %183 = sbr.rel (%p181) target = $region32
      $region31: #{tpu_custom_call.1} parent=5 // pred_region
        // Predicated region
        $region33: #{tpu_custom_call.1} parent=31 // pred_check
          %p184 = pneg %p37
        $region34: #{tpu_custom_call.1} parent=31 // pred_check_branch
          %186 = sbr.rel (%p184) target = $region36
        $region35: #{tpu_custom_call.1} parent=31 // pred_region
          %s187 = sand.u32 %s27, 1
          %s188 = scalar_lea.sflag [#allocation3], %s187
          %s189 = sand.u32 %s27, 1
          %s190 = smul.addr %s189, 64
          %s191 = scalar_lea.vmem [#allocation2], %s190
          %193 = vsyncadd %s188, 0
          %s194 = smul.addr %s17, 8
          %s195 = smul.addr %s194, 8
          %s196 = scalar_lea.hbm %s0, %s195
          %s197 = sshll.u32 %s196, 4
          %s198 = int_to_ptr.hbm [resolvable:$true] %s197
          %s199 = sshll.u32 %s191, 4
          %s200 = int_to_ptr.vmem [resolvable:$true] %s199
          %205 = dma.hbm_to_vmem [thread:$0]  %s198, 1024, %s200, %s188, 256, 256, 16
        $region36: #{tpu_custom_call.1} parent=31 // pred_fallthru
          _
      $region32: #{tpu_custom_call.1} parent=5 // pred_fallthru
        _
      %p206 = scmp.le.s32.totalorder 1, %s17
      %p207 = scmp.lt.s32.totalorder %s17, 3
      %p208 = pnand %p206, %p207
      %p209 = pneg %p208
      // Predicated region
      $region37: #{tpu_custom_call.1} parent=5 // pred_check
        _
      $region38: #{tpu_custom_call.1} parent=5 // pred_check_branch
        %211 = sbr.rel (%p208) target = $region40
      $region39: #{tpu_custom_call.1} parent=5 // pred_region
        %s212 = ssub.s32 %s17, 1
        %s213 = sand.u32 %s30, 1
        %s214 = scalar_lea.sflag [#allocation3], %s213
        %s215 = sand.u32 %s30, 1
        %s216 = smul.addr %s215, 64
        %s217 = scalar_lea.vmem [#allocation2], %s216
        // Predicated region
        $region41: #{tpu_custom_call.1} parent=39 // pred_check
          %p218 = pneg %p43
        $region42: #{tpu_custom_call.1} parent=39 // pred_check_branch
          %220 = sbr.rel (%p218) target = $region44
        $region43: #{tpu_custom_call.1} parent=39 // pred_region
          %222 = dma.done %s214, 1024
        $region44: #{tpu_custom_call.1} parent=39 // pred_fallthru
          _
        %s223 = sand.u32 %s30, 1
        %s224 = scalar_lea.sflag [#allocation3], %s223
        %s225 = sand.u32 %s30, 1
        %s226 = smul.addr %s225, 64
        %s227 = scalar_lea.vmem [#allocation2], %s226
        %p228 = pneg %p43
        %p229 = pneg %p40
        %p230 = pneg %p64
        %p231 = pneg %p61
        %p232 = pneg %p85
        %p233 = pneg %p82
        %p234 = pneg %p106
        %p235 = pneg %p103
        %p236 = pneg %p127
        %p237 = pneg %p124
        %p238 = pneg %p153
        %p239 = pneg %p150
        %s240 = sand.u32 %s140, 1
        %s241 = scalar_lea.sflag [#allocation4], %s240
        %s242 = sand.u32 %s140, 1
        %s243 = smul.addr %s242, 64
        %s244 = scalar_lea.vmem [#allocation5], %s243
        %v245 = vld [vmem:[%s217] sm:$0xff]
        %v246 = vld [vmem:[%s217 + $0x8] sm:$0xff]
        %v247 = vld [vmem:[%s217 + $0x10] sm:$0xff]
        %v248 = vld [vmem:[%s217 + $0x18] sm:$0xff]
        %v249 = vld [vmem:[%s217 + $0x20] sm:$0xff]
        %v250 = vld [vmem:[%s217 + $0x28] sm:$0xff]
        %v251 = vld [vmem:[%s217 + $0x30] sm:$0xff]
        %v252 = vld [vmem:[%s217 + $0x38] sm:$0xff]
        %v253 = vadd.f32 %v245, %v246
        %254 = vadd.xlane.f32.xlu0 %v253
        %v255 = vpop.xlane.xlu0 %254
        %v256 = vadd.f32 %v247, %v248
        %257 = vadd.xlane.f32.xlu0 %v256
        %v258 = vpop.xlane.xlu0 %257
        %v259 = vadd.f32 %v249, %v250
        %260 = vadd.xlane.f32.xlu0 %v259
        %v261 = vpop.xlane.xlu0 %260
        %v262 = vadd.f32 %v251, %v252
        %263 = vadd.xlane.f32.xlu0 %v262
        %v264 = vpop.xlane.xlu0 %263
        %v265 = vmul.f32 %v255, 0.00390625
        %v266 = vmul.f32 %v258, 0.00390625
        %v267 = vmul.f32 %v261, 0.00390625
        %v268 = vmul.f32 %v264, 0.00390625
        %v269 = vmax.f32 %v245, %v246
        %270 = vmax.xlane.f32.xlu0 %v269
        %v271 = vpop.xlane.xlu0 %270
        %v272 = vmax.f32 %v247, %v248
        %273 = vmax.xlane.f32.xlu0 %v272
        %v274 = vpop.xlane.xlu0 %273
        %v275 = vmax.f32 %v249, %v250
        %276 = vmax.xlane.f32.xlu0 %v275
        %v277 = vpop.xlane.xlu0 %276
        %v278 = vmax.f32 %v251, %v252
        %279 = vmax.xlane.f32.xlu0 %v278
        %v280 = vpop.xlane.xlu0 %279
        %v285 = vlaneseq
        %v286 = vand.u32 %v285, 127
        %v287 = vperm.slane %v265, %v286
        %v288 = vadd.s32 %v286, 4294967288
        %v289 = vperm.slane %v266, %v288
        %vm290 = vcmask 130112
        %v291 = vsel %vm290, %v289, %v287
        %v292 = vadd.s32 %v286, 4294967280
        %v293 = vperm.slane %v267, %v292
        %vm294 = vcmask 195712
        %v295 = vsel %vm294, %v293, %v291
        %v296 = vadd.s32 %v286, 4294967272
        %v297 = vperm.slane %v268, %v296
        %vm298 = vcmask 261312
        %v299 = vsel %vm298, %v297, %v295
        %v305 = vperm.slane %v271, %v286
        %v306 = vperm.slane %v274, %v288
        %v307 = vsel %vm290, %v306, %v305
        %v308 = vperm.slane %v277, %v292
        %v309 = vsel %vm294, %v308, %v307
        %v310 = vperm.slane %v280, %v296
        %v311 = vsel %vm298, %v310, %v309
        %vm313 = vcmask 1040384
        %v314 = vsel %vm313, %v299, %v311
        %v315 = vld [vmem:[%s1] sm:$0xff]
        %v316 = vld [vmem:[%s1 + $0x8] sm:$0xff]
        %v317 = vld [vmem:[%s1 + $0x10] sm:$0xff]
        %v318 = vld [vmem:[%s1 + $0x18] sm:$0xff]
        %v319 = vld [vmem:[%s2] sm:$0x1]
        %v321 = vperm.slane %v319, 0
        %vm323 = vcmask 261120
        %v325 = vsel %vm323, %v314, 0
        %327 = vmatpush.msra.mxu0 0.0
        %328 = vmatpush.msra.mxu0 0.0
        %329 = vmatpush.msra.mxu0 0.0
        %330 = vmatpush.msra.mxu0 0.0
        %331 = vmatpush.msra.mxu0 0.0
        %332 = vmatpush.msra.mxu0 0.0
        %333 = vmatpush.msra.mxu0 0.0
        %334 = vmatpush.msra.mxu0 0.0
        %335 = vmatpush.msra.mxu0 0.0
        %336 = vmatpush.msra.mxu0 0.0
        %337 = vmatpush.msra.mxu0 0.0
        %338 = vmatpush.msra.mxu0 0.0
        %339 = vmatpush.msra.mxu0 %v318
        %340 = vmatpush.msra.mxu0 %v317
        %341 = vmatpush.msra.mxu0 %v316
        %342 = vmatpush.msra.mxu0 %v315
        %343 = vmatmul.f32.gmra.mxu0 %v325
        %v344 = vpop.f32.mrf.mxu0
        %v345 = vadd.f32 %v321, %v344
        %346 = vdwg.mxu0
        %v347 = vmax.f32 %v345, 0.0
        %v348 = vld [vmem:[%s3] sm:$0x3]
        %v349 = vld [vmem:[%s4] sm:$0x1]
        %v351 = vperm.slane %v349, 0
        %vm353 = vcmask 15360
        %v355 = vsel %vm353, %v347, 0
        %vm357 = vcmask 1041408
        %v359 = vsel %vm357, %v348, 0
        %361 = vmatpush.msra.mxu0 0.0
        %362 = vmatpush.msra.mxu0 0.0
        %363 = vmatpush.msra.mxu0 0.0
        %364 = vmatpush.msra.mxu0 0.0
        %365 = vmatpush.msra.mxu0 0.0
        %366 = vmatpush.msra.mxu0 0.0
        %367 = vmatpush.msra.mxu0 0.0
        %368 = vmatpush.msra.mxu0 0.0
        %369 = vmatpush.msra.mxu0 0.0
        %370 = vmatpush.msra.mxu0 0.0
        %371 = vmatpush.msra.mxu0 0.0
        %372 = vmatpush.msra.mxu0 0.0
        %373 = vmatpush.msra.mxu0 0.0
        %374 = vmatpush.msra.mxu0 0.0
        %375 = vmatpush.msra.mxu0 0.0
        %376 = vmatpush.msra.mxu0 %v359
        %377 = vmatmul.f32.gmra.mxu0 %v355
        %v378 = vpop.f32.mrf.mxu0
        %v379 = vadd.f32 %v351, %v378
        %380 = vdwg.mxu0
        %v382 = vrot.slane %v379, 1
        %v384 = vadd.f32 %v379, %v382
        %v385 = vxor.u32 %v384, 2147483648
        %v386 = vmul.f32 %v385, 1.442695
        %v387 = vpow.pop %v386
        %v388 = vadd.f32 %v387, 1.0
        %v389 = vrcp.pop %v388
        %v390 = vmul.f32 %v388, %v389
        %v391 = vsub.f32 1.0, %v390
        %v392 = vmul.f32 %v389, %v391
        %v393 = vadd.f32 %v389, %v392
        %vm394 = vweird.f32 %v388
        %vm395 = vweird.f32 %v389
        %vm396 = vmor %vm394, %vm395
        %v397 = vsel %vm396, %v389, %v393
        %v398 = vand.u32 2147483647, %v388
        %vm399 = vcmp.eq.f32.partialorder %v398, 8.507059e+37
        %v400 = vand.u32 %v388, 2147483648
        %v401 = vor.u32 1.1754944e-38, %v400
        %v402 = vsel %vm399, %v401, %v397
        %v403 = vmul.f32 1.0, %v402
        %v404 = vperm.slane %v403, 0
        %v405 = vlaneseq
        %v406 = vshrl.u32 %v405, 7
        %408 = vset.pattern.permute.xlu0 %v406
        %409 = vperm.xlu0 %408, %v404
        %v410 = vpop.permute.xlu0 %409
        %v411 = vlaneseq
        %v412 = vshrl.u32 %v411, 7
        %v413 = vadd.s32 %v412, 8
        %414 = vset.pattern.permute.xlu0 %v413
        %415 = vperm.xlu0 %414, %v404
        %v416 = vpop.permute.xlu0 %415
        %v417 = vlaneseq
        %v418 = vshrl.u32 %v417, 7
        %v419 = vadd.s32 %v418, 16
        %420 = vset.pattern.permute.xlu0 %v419
        %421 = vperm.xlu0 %420, %v404
        %v422 = vpop.permute.xlu0 %421
        %v423 = vlaneseq
        %v424 = vshrl.u32 %v423, 7
        %v425 = vadd.s32 %v424, 24
        %426 = vset.pattern.permute.xlu0 %v425
        %427 = vperm.xlu0 %426, %v404
        %v428 = vpop.permute.xlu0 %427
        %v429 = vmul.f32 %v245, %v410
        %v430 = vmul.f32 %v246, %v410
        %v431 = vmul.f32 %v247, %v416
        %v432 = vmul.f32 %v248, %v416
        %v433 = vmul.f32 %v249, %v422
        %v434 = vmul.f32 %v250, %v422
        %v435 = vmul.f32 %v251, %v428
        %v436 = vmul.f32 %v252, %v428
        %437 = vst [vmem:[%s244] sm:$0xff] %v429
        %438 = vst [vmem:[%s244 + $0x8] sm:$0xff] %v430
        %439 = vst [vmem:[%s244 + $0x10] sm:$0xff] %v431
        %440 = vst [vmem:[%s244 + $0x18] sm:$0xff] %v432
        %441 = vst [vmem:[%s244 + $0x20] sm:$0xff] %v433
        %442 = vst [vmem:[%s244 + $0x28] sm:$0xff] %v434
        %443 = vst [vmem:[%s244 + $0x30] sm:$0xff] %v435
        %444 = vst [vmem:[%s244 + $0x38] sm:$0xff] %v436
        %s445 = sand.u32 %s140, 1
        %s446 = scalar_lea.sflag [#allocation4], %s445
        %s447 = sand.u32 %s140, 1
        %s448 = smul.addr %s447, 64
        %s449 = scalar_lea.vmem [#allocation5], %s448
        // Predicated region
        $region45: #{tpu_custom_call.1} parent=39 // pred_check
          %p450 = pneg %p150
        $region46: #{tpu_custom_call.1} parent=39 // pred_check_branch
          %452 = sbr.rel (%p450) target = $region48
        $region47: #{tpu_custom_call.1} parent=39 // pred_region
          %454 = vsyncadd %s446, 0
          %s455 = smul.addr %s22, 8
          %s456 = smul.addr %s455, 8
          %s457 = scalar_lea.hbm %s5, %s456
          %s458 = sshll.u32 %s449, 4
          %s459 = int_to_ptr.vmem [resolvable:$true] %s458
          %s460 = sshll.u32 %s457, 4
          %s461 = int_to_ptr.hbm [resolvable:$true] %s460
          %466 = dma.vmem_to_hbm [thread:$0]  %s459, 1024, %s461, %s446, 256, 256, 16
        $region48: #{tpu_custom_call.1} parent=39 // pred_fallthru
          _
      $region40: #{tpu_custom_call.1} parent=5 // pred_fallthru
        _
      %p467 = scmp.le.s32.totalorder 2, %s17
      // Predicated region
      $region49: #{tpu_custom_call.1} parent=5 // pred_check
        %p468 = pneg %p467
      $region50: #{tpu_custom_call.1} parent=5 // pred_check_branch
        %470 = sbr.rel (%p468) target = $region52
      $region51: #{tpu_custom_call.1} parent=5 // pred_region
        %s471 = ssub.s32 %s17, 2
        // Predicated region
        $region53: #{tpu_custom_call.1} parent=51 // pred_check
          %p472 = pneg %p156
        $region54: #{tpu_custom_call.1} parent=51 // pred_check_branch
          %474 = sbr.rel (%p472) target = $region56
        $region55: #{tpu_custom_call.1} parent=51 // pred_region
          %s475 = sand.u32 %s141, 1
          %s476 = scalar_lea.sflag [#allocation4], %s475
          %s477 = sand.u32 %s141, 1
          %s478 = smul.addr %s477, 64
          %s479 = scalar_lea.vmem [#allocation5], %s478
          %481 = dma.done %s476, 1024
        $region56: #{tpu_custom_call.1} parent=51 // pred_fallthru
          _
      $region52: #{tpu_custom_call.1} parent=5 // pred_fallthru
        _
    $region6: #{tpu_custom_call.1} parent=1 // loop_footer
      %s21 = sadd.s32 1, %s17
    $region7: #{tpu_custom_call.1} parent=1 // loop_footer_branch
      %16 = sbr.rel target = $region3
    $region8: #{tpu_custom_call.1} parent=1 // loop_exit
      _
    %482 = vsyncpa [#allocation3], 1
    %s483 = scalar_lea.sflag [#allocation3], 1
    %484 = vsyncpa %s483, 1
    %485 = vsyncpa [#allocation4], 1
    %s486 = scalar_lea.sflag [#allocation4], 1
    %487 = vsyncpa %s486, 1

</llo_original>
